<compile_context>
chip_gen: v5e
topology: v5e:2x2
jax: 0.10.0
libtpu: 0.0.40
codegen_flags: <defaults>
</compile_context>

<pallas_src>
import math
import functools

import jax
import jax.numpy as jnp
from jax import lax
from jax.experimental import pallas as pl
from jax.experimental.pallas import tpu as pltpu


def _round_up(x, m):
    return ((x + m - 1) // m) * m


def _vmem_budget_bytes():
    """Per-generation VMEM budget (bytes) the kernels may use."""
    cap = 64 * 2**20                           # safe default = v7x physical VMEM
    try:
        cap = int(pltpu.get_tpu_info().vmem_capacity_bytes)
    except Exception:
        pass
    # ~85% of physical: ~54 MiB on v7x (64 MiB), ~108 MiB on v5e/v6e (128 MiB).
    return int(min(cap * 0.85, 110 * 2**20))


# ---------------------------------------------------------------------------
# Projection kernel:  (B, S, D) @ (D, D) -> (B, H, S, dh)   (per-head layout)
# ---------------------------------------------------------------------------
def _proj_kernel(x_ref, w_ref, o_ref, *, num_heads, d_head, out_scale):
    x = x_ref[0]                                            # (tm, D)
    # Full-width matmul (N = D) on the MXU, f32 accumulation.
    y = jnp.dot(x, w_ref[...], preferred_element_type=jnp.float32)
    if out_scale != 1.0:
        # 1/sqrt(d_head) folded here (Q only), in f32 before the cast, so the
        # attention kernel never does a (tq x Sk) scale multiply.
        y = y * out_scale
    y = y.astype(o_ref.dtype)
    for h in range(num_heads):                              # static unroll
        o_ref[0, h] = y[:, h * d_head:(h + 1) * d_head]


def _project(x, w, *, num_heads, d_head, row_tile, out_scale=1.0,
             vmem_limit):
    """Project x (B, S, D) by w (D, D) into per-head layout (B, H, S_pad, dh)."""
    B, S, D = x.shape
    S_pad = _round_up(S, row_tile)
    if S_pad != S:
        x = jnp.pad(x, ((0, 0), (0, S_pad - S), (0, 0)))
    n_rows = S_pad // row_tile

    kernel = functools.partial(_proj_kernel, num_heads=num_heads,
                               d_head=d_head, out_scale=float(out_scale))
    # TODO(synk): for very large D the resident (D, D) weight should be tiled
    #             along its K/N dims; fine for typical d_model.
    return pl.pallas_call(
        kernel,
        out_shape=jax.ShapeDtypeStruct((B, num_heads, S_pad, d_head), x.dtype),
        grid_spec=pltpu.PrefetchScalarGridSpec(
            num_scalar_prefetch=0,
            grid=(B, n_rows),
            in_specs=[
                pl.BlockSpec((1, row_tile, D), lambda b, i: (b, i, 0)),
                pl.BlockSpec((D, D), lambda b, i: (0, 0)),     # weight resident
            ],
            out_specs=pl.BlockSpec((1, num_heads, row_tile, d_head),
                                   lambda b, i: (b, 0, i, 0)),
        ),
        compiler_params=pltpu.CompilerParams(
            dimension_semantics=("parallel", "parallel"),
            vmem_limit_bytes=vmem_limit,
        ),
    )(x, w)


# ---------------------------------------------------------------------------
# Fused flash-attention + output-projection kernel
# grid = (batch, q_tile, head, kv_tile); head & kv_tile are reductions.
# ---------------------------------------------------------------------------
def _attn_kernel(q_ref, k_ref, v_ref, wo_ref, o_ref,
                 acc_out, acc_attn, m_scr, l_scr,
                 *, sk_valid, tk, d_head, needs_mask):
    h = pl.program_id(2)
    j = pl.program_id(3)
    n_heads = pl.num_programs(2)
    n_kv = pl.num_programs(3)

    @pl.when(jnp.logical_and(h == 0, j == 0))
    def _():
        acc_out[...] = jnp.zeros_like(acc_out)

    @pl.when(j == 0)
    def _():
        acc_attn[...] = jnp.zeros_like(acc_attn)
        m_scr[...] = jnp.full_like(m_scr, -jnp.inf)
        l_scr[...] = jnp.zeros_like(l_scr)

    q = q_ref[0, 0]                 # (tq, dh) — already scaled by 1/sqrt(dh)
    k = k_ref[0, 0]                 # (tk, dh)
    v = v_ref[0, 0]                 # (tk, dh)

    # scores = q @ k^T : contract dh directly (no transpose), f32 accumulate.
    s = lax.dot_general(q, k, (((1,), (1,)), ((), ())),
                        preferred_element_type=jnp.float32)      # (tq, tk)

    if needs_mask:
        # Mask padded key positions (Sk rounded up to a multiple of tk).
        kv_pos = j * tk + lax.broadcasted_iota(jnp.int32, s.shape, 1)
        s = jnp.where(kv_pos < sk_valid, s, -1e30)
    # TODO(synk): user-provided attention mask (masked_fill(mask==0, -1e9))
    #             not implemented.

    # Online (flash) softmax, entirely in f32.
    m_prev = m_scr[...]
    m_new = jnp.maximum(m_prev, jnp.max(s, axis=-1, keepdims=True))
    alpha = jnp.exp(m_prev - m_new)
    p = jnp.exp(s - m_new)
    l_scr[...] = alpha * l_scr[...] + jnp.sum(p, axis=-1, keepdims=True)
    acc_attn[...] = alpha * acc_attn[...] + jnp.dot(
        p.astype(v.dtype), v, preferred_element_type=jnp.float32)
    m_scr[...] = m_new
    # TODO(synk): training-mode dropout on p not emitted (eval-mode identity).

    last_kv = j == n_kv - 1

    @pl.when(last_kv)
    def _():
        inv_l = pl.reciprocal(l_scr[...], approx=True)          # EUP slot
        attn = (acc_attn[...] * inv_l).astype(v.dtype)          # (tq, dh)
        # Head h's slice of the resident Wo: rows [h*dh, (h+1)*dh).
        wo_h = wo_ref[pl.ds(pl.multiple_of(h * d_head, d_head), d_head), :]
        acc_out[...] += jnp.dot(attn, wo_h,
                                preferred_element_type=jnp.float32)

    @pl.when(jnp.logical_and(last_kv, h == n_heads - 1))
    def _():
        o_ref[0] = acc_out[...].astype(o_ref.dtype)


def _attn_vmem_bytes(tq, tk, dh, D, elt):
    """Approximate VMEM residency of the attention kernel (bytes)."""
    blocks = 2 * elt * (tq * dh          # Q tile   (double-buffered)
                        + 2 * tk * dh    # K + V tiles
                        + tq * D)        # output tile
    blocks += 2 * elt * D * D            # resident Wo (conservatively x2)
    scratch = 4 * (tq * D + tq * dh + 2 * tq)
    return blocks + scratch + (2 << 20)  # slack for Mosaic internals


# ---------------------------------------------------------------------------
# Public wrapper
# ---------------------------------------------------------------------------
def multi_head_attention(query, key, value, wq, wk, wv, wo, *, num_heads):
    """Forward pass of MultiHeadAttentionBlock (eval mode, mask=None).

    query: (B, Sq, D); key/value: (B, Sk, D).
    wq/wk/wv/wo: (D, D) in (in_features, out_features) layout.
    """
    B, Sq, D = query.shape
    Bk, Sk, Dk = key.shape
    assert key.shape == value.shape and Bk == B and Dk == D
    assert D % num_heads == 0, "d_model must be divisible by num_heads"
    H = num_heads
    dh = D // H
    scale = 1.0 / math.sqrt(dh)
    elt = jnp.dtype(query.dtype).itemsize

    budget = _vmem_budget_bytes()

    # Tile selection: big query tiles (bf16 sublane packing -> multiples of 16),
    # kv tiles lane-aligned to 128.
    tq = min(256, _round_up(Sq, 16))
    tk = min(512, _round_up(Sk, 128))
    # v7x megacore: make sure both TensorCores get a 'parallel' unit of work.
    if B * pl.cdiv(Sq, tq) < 2 and Sq >= 32:
        tq = _round_up(pl.cdiv(Sq, 2), 16)
    # Shrink tiles until the working set fits the per-generation VMEM budget.
    while _attn_vmem_bytes(tq, tk, dh, D, elt) > budget:
        if tq > 64:
            tq //= 2
        elif tk > 128:
            tk = max(128, ((tk // 2) // 128) * 128)
        else:
            break

    # --- Q/K/V projections: run ONCE each, emit per-head (B, H, S_pad, dh). ---
    q = _project(query, wq, num_heads=H, d_head=dh, row_tile=tq,
                 out_scale=scale, vmem_limit=budget)
    k = _project(key, wk, num_heads=H, d_head=dh, row_tile=tk,
                 vmem_limit=budget)
    v = _project(value, wv, num_heads=H, d_head=dh, row_tile=tk,
                 vmem_limit=budget)

    Sq_pad = q.shape[2]
    Sk_pad = k.shape[2]
    n_q = Sq_pad // tq
    n_kv = Sk_pad // tk
    needs_mask = Sk_pad != Sk

    kernel = functools.partial(_attn_kernel, sk_valid=Sk, tk=tk,
                               d_head=dh, needs_mask=needs_mask)

    out = pl.pallas_call(
        kernel,
        out_shape=jax.ShapeDtypeStruct((B, Sq_pad, D), query.dtype),
        grid_spec=pltpu.PrefetchScalarGridSpec(
            num_scalar_prefetch=0,
            grid=(B, n_q, H, n_kv),
            in_specs=[
                pl.BlockSpec((1, 1, tq, dh), lambda b, i, h, j: (b, h, i, 0)),
                pl.BlockSpec((1, 1, tk, dh), lambda b, i, h, j: (b, h, j, 0)),
                pl.BlockSpec((1, 1, tk, dh), lambda b, i, h, j: (b, h, j, 0)),
                pl.BlockSpec((D, D), lambda b, i, h, j: (0, 0)),   # Wo resident
            ],
            out_specs=pl.BlockSpec((1, tq, D), lambda b, i, h, j: (b, i, 0)),
            scratch_shapes=[
                pltpu.VMEM((tq, D), jnp.float32),    # output-projection acc
                pltpu.VMEM((tq, dh), jnp.float32),   # flash attention acc
                pltpu.VMEM((tq, 1), jnp.float32),    # running max m
                pltpu.VMEM((tq, 1), jnp.float32),    # running denom l
            ],
        ),
        compiler_params=pltpu.CompilerParams(
            dimension_semantics=("parallel", "parallel",
                                 "arbitrary", "arbitrary"),
            vmem_limit_bytes=budget,
        ),
    )(q, k, v, wo)

    if Sq_pad != Sq:
        out = out[:, :Sq, :]
    return out


# ---------------------------------------------------------------------------
# Pure-JAX f32 reference (matches the PyTorch forward, mask=None, eval mode).
# ---------------------------------------------------------------------------
def mha_reference(query, key, value, wq, wk, wv, wo, num_heads):
    f32 = jnp.float32
    q = query.astype(f32) @ wq.astype(f32)
    k = key.astype(f32) @ wk.astype(f32)
    v = value.astype(f32) @ wv.astype(f32)
    B, Sq, D = q.shape
    Sk = k.shape[1]
    dh = D // num_heads

    def split(x, S):
        return x.reshape(B, S, num_heads, dh).transpose(0, 2, 1, 3)

    qh, kh, vh = split(q, Sq), split(k, Sk), split(v, Sk)
    s = jnp.einsum("bhqd,bhkd->bhqk", qh, kh) / math.sqrt(dh)
    p = jax.nn.softmax(s, axis=-1)
    x = jnp.einsum("bhqk,bhkd->bhqd", p, vh)
    x = x.transpose(0, 2, 1, 3).reshape(B, Sq, D)
    return x @ wo.astype(f32)


if __name__ == "__main__":
    # Small, TPU-layout-friendly shapes: d_head = 256 / 2 = 128 (one lane tile).
    B, S, d_model, num_heads = 2, 16, 256, 2

    key = jax.random.PRNGKey(0)
    kx, kq, kk, kv, ko = jax.random.split(key, 5)
    lim = 1.0 / math.sqrt(d_model)   # PyTorch nn.Linear init U(-1/sqrt(in), +)
    x = jax.random.normal(kx, (B, S, d_model), jnp.float32)
    wq = jax.random.uniform(kq, (d_model, d_model), jnp.float32, -lim, lim)
    wk = jax.random.uniform(kk, (d_model, d_model), jnp.float32, -lim, lim)
    wv = jax.random.uniform(kv, (d_model, d_model), jnp.float32, -lim, lim)
    wo = jax.random.uniform(ko, (d_model, d_model), jnp.float32, -lim, lim)

    # bf16 MXU operands (f32 accumulation inside the kernels).
    xb = x.astype(jnp.bfloat16)
    wqb, wkb, wvb, wob = (w.astype(jnp.bfloat16) for w in (wq, wk, wv, wo))

    # Self-attention: query = key = value.
    y = multi_head_attention(xb, xb, xb, wqb, wkb, wvb, wob,
                             num_heads=num_heads)
    y = jax.block_until_ready(y)

    # Reference computed in f32 from the same bf16-quantized inputs, so the
    # comparison only measures in-kernel rounding (bf16 intermediates).
    ref = mha_reference(xb, xb, xb, wqb, wkb, wvb, wob, num_heads)
    y_f32 = y.astype(jnp.float32)
    assert y.shape == (B, S, d_model)
    assert jnp.allclose(y_f32, ref, atol=2e-2, rtol=2e-2), (
        "mismatch vs reference, max abs err = "
        f"{float(jnp.max(jnp.abs(y_f32 - ref)))}")

    print("KERNEL_OK")
</pallas_src>

<mosaic_0001>
module attributes {stable_mosaic.version = 11 : i64} {
  func.func @_proj_kernel(%arg0: i32, %arg1: i32, %arg2: memref<1x16x256xbf16, #tpu.memory_space<vmem>>, %arg3: memref<256x256xbf16, #tpu.memory_space<vmem>>, %arg4: memref<1x2x16x128xbf16, #tpu.memory_space<vmem>>) attributes {dimension_semantics = [#tpu.dimension_semantics<parallel>, #tpu.dimension_semantics<parallel>], iteration_bounds = array<i64: 2, 1>, scalar_prefetch = 0 : i64, scratch_operands = 0 : i64, tpu.core_type = #tpu.core_type<tc>, window_params = [{transform_indices = @transform_0, window_bounds = array<i64: 1, 16, 256>}, {pipeline_mode = #tpu.pipeline_mode<synchronous>, transform_indices = @transform_1, window_bounds = array<i64: 256, 256>}, {transform_indices = @transform_2, window_bounds = array<i64: 1, 2, 16, 128>}]} {
    %c0 = arith.constant 0 : index
    %c0_0 = arith.constant 0 : index
    %c0_1 = arith.constant 0 : index
    %0 = vector.load %arg2[%c0, %c0_0, %c0_1] : memref<1x16x256xbf16, #tpu.memory_space<vmem>>, vector<1x16x256xbf16>
    %1 = vector.shape_cast %0 : vector<1x16x256xbf16> to vector<16x256xbf16>
    %c0_2 = arith.constant 0 : index
    %c0_3 = arith.constant 0 : index
    %2 = vector.load %arg3[%c0_2, %c0_3] : memref<256x256xbf16, #tpu.memory_space<vmem>>, vector<256x256xbf16>
    %cst = arith.constant dense<0.000000e+00> : vector<16x256xf32>
    %3 = tpu.matmul %1, %2, %cst {dimension_numbers = #tpu.dot_dimension_numbers<[1], [0], [0], [1], [0, 0, 1, 1], [], []>} : vector<16x256xbf16>, vector<256x256xbf16>, vector<16x256xf32> -> vector<16x256xf32>
    %cst_4 = arith.constant 0.0883883461 : f32
    %4 = vector.broadcast %cst_4 : f32 to vector<16x256xf32>
    %5 = arith.mulf %3, %4 : vector<16x256xf32>
    %6 = arith.truncf %5 : vector<16x256xf32> to vector<16x256xbf16>
    %7 = vector.extract_strided_slice %6 {offsets = [0, 0], sizes = [16, 128], strides = [1, 1]} : vector<16x256xbf16> to vector<16x128xbf16>
    %c0_5 = arith.constant 0 : index
    %c0_6 = arith.constant 0 : index
    %c0_7 = arith.constant 0 : index
    %c0_8 = arith.constant 0 : index
    %8 = vector.load %arg4[%c0_5, %c0_6, %c0_7, %c0_8] : memref<1x2x16x128xbf16, #tpu.memory_space<vmem>>, vector<1x1x16x128xbf16>
    %9 = vector.shape_cast %8 : vector<1x1x16x128xbf16> to vector<16x128xbf16>
    %10 = vector.shape_cast %7 : vector<16x128xbf16> to vector<1x1x16x128xbf16>
    tpu.vector_store %arg4[%c0_5, %c0_6, %c0_7, %c0_8], %10 {strides = array<i32>} : memref<1x2x16x128xbf16, #tpu.memory_space<vmem>>, vector<1x1x16x128xbf16>,
    %11 = vector.extract_strided_slice %6 {offsets = [0, 128], sizes = [16, 128], strides = [1, 1]} : vector<16x256xbf16> to vector<16x128xbf16>
    %c0_9 = arith.constant 0 : index
    %c1 = arith.constant 1 : index
    %c0_10 = arith.constant 0 : index
    %c0_11 = arith.constant 0 : index
    %12 = vector.load %arg4[%c0_9, %c1, %c0_10, %c0_11] : memref<1x2x16x128xbf16, #tpu.memory_space<vmem>>, vector<1x1x16x128xbf16>
    %13 = vector.shape_cast %12 : vector<1x1x16x128xbf16> to vector<16x128xbf16>
    %14 = vector.shape_cast %11 : vector<16x128xbf16> to vector<1x1x16x128xbf16>
    tpu.vector_store %arg4[%c0_9, %c1, %c0_10, %c0_11], %14 {strides = array<i32>} : memref<1x2x16x128xbf16, #tpu.memory_space<vmem>>, vector<1x1x16x128xbf16>,
    return
  }
  func.func @transform_0(%arg0: i32, %arg1: i32) -> (i32, i32, i32) {
    %c0_i32 = arith.constant 0 : i32
    %c0_i32_0 = arith.constant 0 : i32
    return %arg0, %arg1, %c0_i32 : i32, i32, i32
  }
  func.func @transform_1(%arg0: i32, %arg1: i32) -> (i32, i32) {
    %c0_i32 = arith.constant 0 : i32
    %c0_i32_0 = arith.constant 0 : i32
    %c0_i32_1 = arith.constant 0 : i32
    return %c0_i32, %c0_i32_0 : i32, i32
  }
  func.func @transform_2(%arg0: i32, %arg1: i32) -> (i32, i32, i32, i32) {
    %c0_i32 = arith.constant 0 : i32
    %c0_i32_0 = arith.constant 0 : i32
    %c0_i32_1 = arith.constant 0 : i32
    return %arg0, %c0_i32, %arg1, %c0_i32_0 : i32, i32, i32, i32
  }
}

</mosaic_0001>

<llo_original>
// kernel: tpu_custom_call.1
$region0: #{tpu_custom_call.1}
  #allocation0 [shape = 'u32[]', space=smem, size = 0x4, offset = 0x4, fixed_abs, tag = 'smem constant byte address 0x4 - core index']
  #allocation1 [shape = 'u32[72,128]{1,0:T(1,128)}', space=vmem, size = 0x9000, scoped, tag = 'internal scratch']
  %s0 = inlined_call_operand.hbm [shape: bf16[2,16,256], index: 0, kind: input, shape index: {}]
  %s1 = inlined_call_operand.hbm [shape: bf16[256,256], index: 1, kind: input, shape index: {}]
  %s2 = inlined_call_operand.hbm [shape: bf16[2,2,16,128], index: 2, kind: output, shape index: {}]
  %s3 = sld [smem:[#allocation0]]
  $region49: #{tpu_custom_call.1} parent=0
    _
  %s5 = ssub.s32 1, %s3
  %s6 = scalar_select 0, %s5, %s3
  $region1: #{tpu_custom_call.1} parent=0
    #allocation2 [shape = 'u8[16384]{0}', space=vmem, size = 0x4000, scoped, tag = 'input window, operand 0']
    #allocation3 [shape = 's32[2]{0}', space=sflag, size = 0x8, scoped, tag = 'scoped memory for tpu_custom_call.1']
    #allocation4 [shape = 's32[2]{0}', space=sflag, size = 0x8, scoped, tag = 'scoped memory for tpu_custom_call.1']
    #allocation5 [shape = 'u8[131072]{0}', space=vmem, size = 0x20000, scoped, tag = 'input window, operand 1, single buffered']
    #allocation6 [shape = 's32[1]{0}', space=sflag, size = 0x4, scoped, tag = 'scoped memory for tpu_custom_call.1']
    #allocation7 [shape = 'u8[16384]{0}', space=vmem, size = 0x4000, scoped, tag = 'output window, operand 0']
    %7 = vsyncpa [#allocation3], 0
    %s8 = scalar_lea.sflag [#allocation3], 1
    %9 = vsyncpa %s8, 0
    %10 = vsyncpa [#allocation6], 0
    %11 = vsyncpa [#allocation4], 0
    %s12 = scalar_lea.sflag [#allocation4], 1
    %13 = vsyncpa %s12, 0
    loop: start=0, step=1, limit=4
    $region2: #{tpu_custom_call.1} parent=1 // loop_pre_header
      _
    $region3: #{tpu_custom_call.1} parent=1 // loop_header
      %s15 = sphi 0, %s19
      %p16 = scmp.ge.s32.totalorder %s15, 4
      %s22 = sphi 0, %s34
      %s23 = sphi 0, %s30
      %s24 = sphi 0, %s22
      %s25 = sphi 0, %s23
      %s26 = sphi 0, %s24
      %s27 = sphi 0, %s25
      %s39 = sphi 0, %s41
      %s42 = sphi 0, %s39
      %s43 = sphi 0, %s42
      %s59 = sphi 0, %s43
      %s63 = sphi 0, %s63
      %s65 = sphi 0, %s63
      %s66 = sphi 0, %s65
      %s80 = sphi 0, %s66
      %s88 = sphi 0, %s90
      %s91 = sphi 0, %s88
      %s92 = sphi 0, %s91
      %s108 = sphi 0, %s92
    $region4: #{tpu_custom_call.1} parent=1 // loop_header_branch
      %18 = sbr.rel (%p16) target = $region8
    $region5: #{tpu_custom_call.1} parent=1 // loop_body
      %s20 = ssub.s32 %s15, 1
      %s21 = ssub.s32 %s15, 2
      %s28 = sadd.s32 1, %s23
      %p29 = scmp.ge.s32.totalorder %s28, 1
      %s30 = scalar_select %p29, 0, %s28
      %s31 = sadd.s32 1, %s22
      %s32 = scalar_select %p29, %s31, %s22
      %p33 = scmp.ge.s32.totalorder %s32, 2
      %s34 = scalar_select %p33, 0, %s32
      %s35 = ssub.s32 %s22, %s34
      %s36 = ssub.s32 %s23, %s30
      %s37 = sor.u32 %s35, %s36
      %p38 = scmp.eq.s32.totalorder %s37, 0
      %s40 = sadd.s32 %s39, 1
      %s41 = scalar_select %p38, %s39, %s40
      %p44 = pneg %p38
      %p45 = scmp.eq.s32.totalorder %s15, 1
      %p46 = por %p44, %p45
      %p47 = scmp.ne.s32.totalorder %s39, %s42
      %p48 = scmp.eq.s32.totalorder %s15, 0
      %p49 = por %p47, %p48
      %p50 = scmp.ne.s32.totalorder %s39, %s42
      %p51 = scmp.eq.s32.totalorder %s20, 1
      %p52 = por %p50, %p51
      %p53 = scmp.ne.s32.totalorder %s42, %s43
      %p54 = scmp.eq.s32.totalorder %s20, 0
      %p55 = por %p53, %p54
      %p56 = scmp.ne.s32.totalorder %s42, %s43
      %p57 = scmp.eq.s32.totalorder %s21, 1
      %p58 = por %p56, %p57
      %p60 = scmp.ne.s32.totalorder %s43, %s59
      %p61 = scmp.eq.s32.totalorder %s21, 0
      %p62 = por %p60, %p61
      %s64 = sadd.s32 %s63, 1
      %p67 = scmp.eq.s32.totalorder %s15, 1
      %p68 = scmp.ne.s32.totalorder %s63, %s65
      %p69 = scmp.eq.s32.totalorder %s15, 0
      %p70 = por %p68, %p69
      %p71 = scmp.ne.s32.totalorder %s63, %s65
      %p72 = scmp.eq.s32.totalorder %s20, 1
      %p73 = por %p71, %p72
      %p74 = scmp.ne.s32.totalorder %s65, %s66
      %p75 = scmp.eq.s32.totalorder %s20, 0
      %p76 = por %p74, %p75
      %p77 = scmp.ne.s32.totalorder %s65, %s66
      %p78 = scmp.eq.s32.totalorder %s21, 1
      %p79 = por %p77, %p78
      %p81 = scmp.ne.s32.totalorder %s66, %s80
      %p82 = scmp.eq.s32.totalorder %s21, 0
      %p83 = por %p81, %p82
      %s84 = ssub.s32 %s22, %s34
      %s85 = ssub.s32 %s23, %s30
      %s86 = sor.u32 %s84, %s85
      %p87 = scmp.eq.s32.totalorder %s86, 0
      %s89 = sadd.s32 %s88, 1
      %s90 = scalar_select %p87, %s88, %s89
      %p93 = pneg %p87
      %p94 = scmp.eq.s32.totalorder %s15, 1
      %p95 = por %p93, %p94
      %p96 = scmp.ne.s32.totalorder %s88, %s91
      %p97 = scmp.eq.s32.totalorder %s15, 0
      %p98 = por %p96, %p97
      %p99 = scmp.ne.s32.totalorder %s88, %s91
      %p100 = scmp.eq.s32.totalorder %s20, 1
      %p101 = por %p99, %p100
      %p102 = scmp.ne.s32.totalorder %s91, %s92
      %p103 = scmp.eq.s32.totalorder %s20, 0
      %p104 = por %p102, %p103
      %p105 = scmp.ne.s32.totalorder %s91, %s92
      %p106 = scmp.eq.s32.totalorder %s21, 1
      %p107 = por %p105, %p106
      %p109 = scmp.ne.s32.totalorder %s92, %s108
      %p110 = scmp.eq.s32.totalorder %s21, 0
      %p111 = por %p109, %p110
      %p112 = scmp.le.s32.totalorder 1, %s15
      %p113 = scmp.lt.s32.totalorder %s15, 3
      %p114 = pnand %p112, %p113
      %p115 = pneg %p114
      // Predicated region
      $region9: #{tpu_custom_call.1} parent=5 // pred_check
        _
      $region10: #{tpu_custom_call.1} parent=5 // pred_check_branch
        %117 = sbr.rel (%p114) target = $region12
      $region11: #{tpu_custom_call.1} parent=5 // pred_region
        %s118 = ssub.s32 %s15, 1
        // Predicated region
        $region13: #{tpu_custom_call.1} parent=11 // pred_check
          %p119 = pneg %p76
        $region14: #{tpu_custom_call.1} parent=11 // pred_check_branch
          %121 = sbr.rel (%p119) target = $region16
        $region15: #{tpu_custom_call.1} parent=11 // pred_region
          %123 = vsyncadd [#allocation6], 0
          %s124 = sshll.u32 %s1, 4
          %s125 = int_to_ptr.hbm [resolvable:$true] %s124
          %s126 = sshll.u32 [#allocation5], 4
          %s127 = int_to_ptr.vmem [resolvable:$true] %s126
          %132 = dma.hbm_to_vmem [thread:$0]  %s125, 4096, %s127, [#allocation6], 128, 128, 8
        $region16: #{tpu_custom_call.1} parent=11 // pred_fallthru
          _
      $region12: #{tpu_custom_call.1} parent=5 // pred_fallthru
        _
      %p133 = scmp.lt.s32.totalorder %s15, 2
      // Predicated region
      $region17: #{tpu_custom_call.1} parent=5 // pred_check
        %p134 = pneg %p133
      $region18: #{tpu_custom_call.1} parent=5 // pred_check_branch
        %136 = sbr.rel (%p134) target = $region20
      $region19: #{tpu_custom_call.1} parent=5 // pred_region
        // Predicated region
        $region21: #{tpu_custom_call.1} parent=19 // pred_check
          %p137 = pneg %p49
        $region22: #{tpu_custom_call.1} parent=19 // pred_check_branch
          %139 = sbr.rel (%p137) target = $region24
        $region23: #{tpu_custom_call.1} parent=19 // pred_region
          %s140 = sand.u32 %s39, 1
          %s141 = scalar_lea.sflag [#allocation3], %s140
          %s142 = sand.u32 %s39, 1
          %s143 = smul.addr %s142, 16
          %s144 = scalar_lea.vmem [#allocation2], %s143
          %s145 = smul.u32 2, %s23
          %147 = vsyncadd %s141, 0
          %s148 = smul.addr %s145, 2
          %s149 = smul.addr %s22, 4
          %s150 = sadd.s32 %s148, %s149
          %s151 = smul.addr %s150, 4
          %s152 = scalar_lea.hbm %s0, %s151
          %s153 = sshll.u32 %s152, 4
          %s154 = int_to_ptr.hbm [resolvable:$true] %s153
          %s155 = sshll.u32 %s144, 4
          %s156 = int_to_ptr.vmem [resolvable:$true] %s155
          %161 = dma.hbm_to_vmem [thread:$0]  %s154, 256, %s156, %s141, 128, 128, 8
        $region24: #{tpu_custom_call.1} parent=19 // pred_fallthru
          _
      $region20: #{tpu_custom_call.1} parent=5 // pred_fallthru
        _
      %p162 = scmp.le.s32.totalorder 1, %s15
      %p163 = scmp.lt.s32.totalorder %s15, 3
      %p164 = pnand %p162, %p163
      %p165 = pneg %p164
      // Predicated region
      $region25: #{tpu_custom_call.1} parent=5 // pred_check
        _
      $region26: #{tpu_custom_call.1} parent=5 // pred_check_branch
        %167 = sbr.rel (%p164) target = $region28
      $region27: #{tpu_custom_call.1} parent=5 // pred_region
        %s168 = ssub.s32 %s15, 1
        %s169 = sand.u32 %s42, 1
        %s170 = scalar_lea.sflag [#allocation3], %s169
        %s171 = sand.u32 %s42, 1
        %s172 = smul.addr %s171, 16
        %s173 = scalar_lea.vmem [#allocation2], %s172
        // Predicated region
        $region29: #{tpu_custom_call.1} parent=27 // pred_check
          %p174 = pneg %p55
        $region30: #{tpu_custom_call.1} parent=27 // pred_check_branch
          %176 = sbr.rel (%p174) target = $region32
        $region31: #{tpu_custom_call.1} parent=27 // pred_region
          %178 = dma.done %s170, 256
        $region32: #{tpu_custom_call.1} parent=27 // pred_fallthru
          _
        // Predicated region
        $region33: #{tpu_custom_call.1} parent=27 // pred_check
          %p179 = pneg %p76
        $region34: #{tpu_custom_call.1} parent=27 // pred_check_branch
          %181 = sbr.rel (%p179) target = $region36
        $region35: #{tpu_custom_call.1} parent=27 // pred_region
          %183 = dma.done [#allocation6], 4096
        $region36: #{tpu_custom_call.1} parent=27 // pred_fallthru
          _
        %s184 = sand.u32 %s42, 1
        %s185 = scalar_lea.sflag [#allocation3], %s184
        %s186 = sand.u32 %s42, 1
        %s187 = smul.addr %s186, 16
        %s188 = scalar_lea.vmem [#allocation2], %s187
        %p189 = pneg %p55
        %p190 = pneg %p52
        %p191 = pneg %p76
        %p192 = pneg %p73
        %p193 = pneg %p104
        %p194 = pneg %p101
        %s195 = sand.u32 %s91, 1
        %s196 = scalar_lea.sflag [#allocation4], %s195
        %s197 = sand.u32 %s91, 1
        %s198 = smul.addr %s197, 16
        %s199 = scalar_lea.vmem [#allocation7], %s198
        %s200 = smul.u32 2, %s25
        %s201 = smul.u32 2, %s25
        %v202 = vld [vmem:[%s173] sm:$0xff]
        %v203 = vld [vmem:[%s173 + $0x8] sm:$0xff]
        %v204 = vld [vmem:[#allocation5] sm:$0xff]
        %v205 = vld [vmem:[#allocation5 + $0x8] sm:$0xff]
        %v206 = vld [vmem:[#allocation5 + $0x10] sm:$0xff]
        %v207 = vld [vmem:[#allocation5 + $0x18] sm:$0xff]
        %v208 = vld [vmem:[#allocation5 + $0x20] sm:$0xff]
        %v209 = vld [vmem:[#allocation5 + $0x28] sm:$0xff]
        %v210 = vld [vmem:[#allocation5 + $0x30] sm:$0xff]
        %v211 = vld [vmem:[#allocation5 + $0x38] sm:$0xff]
        %v212 = vld [vmem:[#allocation5 + $0x40] sm:$0xff]
        %v213 = vld [vmem:[#allocation5 + $0x48] sm:$0xff]
        %v214 = vld [vmem:[#allocation5 + $0x50] sm:$0xff]
        %v215 = vld [vmem:[#allocation5 + $0x58] sm:$0xff]
        %v216 = vld [vmem:[#allocation5 + $0x60] sm:$0xff]
        %v217 = vld [vmem:[#allocation5 + $0x68] sm:$0xff]
        %v218 = vld [vmem:[#allocation5 + $0x70] sm:$0xff]
        %v219 = vld [vmem:[#allocation5 + $0x78] sm:$0xff]
        %v220 = vld [vmem:[#allocation5 + $0x80] sm:$0xff]
        %v221 = vld [vmem:[#allocation5 + $0x88] sm:$0xff]
        %v222 = vld [vmem:[#allocation5 + $0x90] sm:$0xff]
        %v223 = vld [vmem:[#allocation5 + $0x98] sm:$0xff]
        %v224 = vld [vmem:[#allocation5 + $0xa0] sm:$0xff]
        %v225 = vld [vmem:[#allocation5 + $0xa8] sm:$0xff]
        %v226 = vld [vmem:[#allocation5 + $0xb0] sm:$0xff]
        %v227 = vld [vmem:[#allocation5 + $0xb8] sm:$0xff]
        %v228 = vld [vmem:[#allocation5 + $0xc0] sm:$0xff]
        %v229 = vld [vmem:[#allocation5 + $0xc8] sm:$0xff]
        %v230 = vld [vmem:[#allocation5 + $0xd0] sm:$0xff]
        %v231 = vld [vmem:[#allocation5 + $0xd8] sm:$0xff]
        %v232 = vld [vmem:[#allocation5 + $0xe0] sm:$0xff]
        %v233 = vld [vmem:[#allocation5 + $0xe8] sm:$0xff]
        %v234 = vld [vmem:[#allocation5 + $0xf0] sm:$0xff]
        %v235 = vld [vmem:[#allocation5 + $0xf8] sm:$0xff]
        %v238 = vunpack.c.l.b16 %v202
        %v239 = vunpack.c.h.b16 %v202
        %v240 = vunpack.c.l.b16 %v203
        %v241 = vunpack.c.h.b16 %v203
        %v242 = vpack.c.b16 %v240, %v238
        %v243 = vpack.c.b16 %v241, %v239
        %v278 = vunpack.c.l.b16 %v204
        %v279 = vunpack.c.h.b16 %v204
        %v280 = vunpack.c.l.b16 %v205
        %v281 = vunpack.c.h.b16 %v205
        %v282 = vunpack.c.l.b16 %v206
        %v283 = vunpack.c.h.b16 %v206
        %v284 = vunpack.c.l.b16 %v207
        %v285 = vunpack.c.h.b16 %v207
        %v286 = vunpack.c.l.b16 %v208
        %v287 = vunpack.c.h.b16 %v208
        %v288 = vunpack.c.l.b16 %v209
        %v289 = vunpack.c.h.b16 %v209
        %v290 = vunpack.c.l.b16 %v210
        %v291 = vunpack.c.h.b16 %v210
        %v292 = vunpack.c.l.b16 %v211
        %v293 = vunpack.c.h.b16 %v211
        %v294 = vunpack.c.l.b16 %v212
        %v295 = vunpack.c.h.b16 %v212
        %v296 = vunpack.c.l.b16 %v213
        %v297 = vunpack.c.h.b16 %v213
        %v298 = vunpack.c.l.b16 %v214
        %v299 = vunpack.c.h.b16 %v214
        %v300 = vunpack.c.l.b16 %v215
        %v301 = vunpack.c.h.b16 %v215
        %v302 = vunpack.c.l.b16 %v216
        %v303 = vunpack.c.h.b16 %v216
        %v304 = vunpack.c.l.b16 %v217
        %v305 = vunpack.c.h.b16 %v217
        %v306 = vunpack.c.l.b16 %v218
        %v307 = vunpack.c.h.b16 %v218
        %v308 = vunpack.c.l.b16 %v219
        %v309 = vunpack.c.h.b16 %v219
        %v310 = vunpack.c.l.b16 %v220
        %v311 = vunpack.c.h.b16 %v220
        %v312 = vunpack.c.l.b16 %v221
        %v313 = vunpack.c.h.b16 %v221
        %v314 = vunpack.c.l.b16 %v222
        %v315 = vunpack.c.h.b16 %v222
        %v316 = vunpack.c.l.b16 %v223
        %v317 = vunpack.c.h.b16 %v223
        %v318 = vunpack.c.l.b16 %v224
        %v319 = vunpack.c.h.b16 %v224
        %v320 = vunpack.c.l.b16 %v225
        %v321 = vunpack.c.h.b16 %v225
        %v322 = vunpack.c.l.b16 %v226
        %v323 = vunpack.c.h.b16 %v226
        %v324 = vunpack.c.l.b16 %v227
        %v325 = vunpack.c.h.b16 %v227
        %v326 = vunpack.c.l.b16 %v228
        %v327 = vunpack.c.h.b16 %v228
        %v328 = vunpack.c.l.b16 %v229
        %v329 = vunpack.c.h.b16 %v229
        %v330 = vunpack.c.l.b16 %v230
        %v331 = vunpack.c.h.b16 %v230
        %v332 = vunpack.c.l.b16 %v231
        %v333 = vunpack.c.h.b16 %v231
        %v334 = vunpack.c.l.b16 %v232
        %v335 = vunpack.c.h.b16 %v232
        %v336 = vunpack.c.l.b16 %v233
        %v337 = vunpack.c.h.b16 %v233
        %v338 = vunpack.c.l.b16 %v234
        %v339 = vunpack.c.h.b16 %v234
        %v340 = vunpack.c.l.b16 %v235
        %v341 = vunpack.c.h.b16 %v235
        %v342 = vpack.c.b16 %v280, %v278
        %v343 = vpack.c.b16 %v281, %v279
        %v344 = vpack.c.b16 %v284, %v282
        %v345 = vpack.c.b16 %v285, %v283
        %v346 = vpack.c.b16 %v288, %v286
        %v347 = vpack.c.b16 %v289, %v287
        %v348 = vpack.c.b16 %v292, %v290
        %v349 = vpack.c.b16 %v293, %v291
        %v350 = vpack.c.b16 %v296, %v294
        %v351 = vpack.c.b16 %v297, %v295
        %v352 = vpack.c.b16 %v300, %v298
        %v353 = vpack.c.b16 %v301, %v299
        %v354 = vpack.c.b16 %v304, %v302
        %v355 = vpack.c.b16 %v305, %v303
        %v356 = vpack.c.b16 %v308, %v306
        %v357 = vpack.c.b16 %v309, %v307
        %v358 = vpack.c.b16 %v312, %v310
        %v359 = vpack.c.b16 %v313, %v311
        %v360 = vpack.c.b16 %v316, %v314
        %v361 = vpack.c.b16 %v317, %v315
        %v362 = vpack.c.b16 %v320, %v318
        %v363 = vpack.c.b16 %v321, %v319
        %v364 = vpack.c.b16 %v324, %v322
        %v365 = vpack.c.b16 %v325, %v323
        %v366 = vpack.c.b16 %v328, %v326
        %v367 = vpack.c.b16 %v329, %v327
        %v368 = vpack.c.b16 %v332, %v330
        %v369 = vpack.c.b16 %v333, %v331
        %v370 = vpack.c.b16 %v336, %v334
        %v371 = vpack.c.b16 %v337, %v335
        %v372 = vpack.c.b16 %v340, %v338
        %v373 = vpack.c.b16 %v341, %v339
        %406 = vmatpush.bf16.msra.mxu0 %v356
        %407 = vmatpush.bf16.msra.mxu0 %v354
        %408 = vmatpush.bf16.msra.mxu0 %v352
        %409 = vmatpush.bf16.msra.mxu0 %v350
        %410 = vmatpush.bf16.msra.mxu0 %v348
        %411 = vmatpush.bf16.msra.mxu0 %v346
        %412 = vmatpush.bf16.msra.mxu0 %v344
        %413 = vmatpush.bf16.msra.mxu0 %v342
        %414 = vmatmul.bf16.gmra.mxu0 %v242
        %v415 = vpop.f32.mrf.mxu0
        %v416 = vadd.f32 0.0, %v415
        %v417 = vpop.f32.mrf.mxu0
        %v418 = vadd.f32 0.0, %v417
        %419 = vdwg.mxu0
        %420 = vmatpush.bf16.msra.mxu0 %v372
        %421 = vmatpush.bf16.msra.mxu0 %v370
        %422 = vmatpush.bf16.msra.mxu0 %v368
        %423 = vmatpush.bf16.msra.mxu0 %v366
        %424 = vmatpush.bf16.msra.mxu0 %v364
        %425 = vmatpush.bf16.msra.mxu0 %v362
        %426 = vmatpush.bf16.msra.mxu0 %v360
        %427 = vmatpush.bf16.msra.mxu0 %v358
        %428 = vmatmul.bf16.gmra.mxu0 %v243
        %v429 = vpop.f32.mrf.mxu0
        %v430 = vadd.f32 %v416, %v429
        %v431 = vpop.f32.mrf.mxu0
        %v432 = vadd.f32 %v418, %v431
        %433 = vdwg.mxu0
        %434 = vmatpush.bf16.msra.mxu0 %v357
        %435 = vmatpush.bf16.msra.mxu0 %v355
        %436 = vmatpush.bf16.msra.mxu0 %v353
        %437 = vmatpush.bf16.msra.mxu0 %v351
        %438 = vmatpush.bf16.msra.mxu0 %v349
        %439 = vmatpush.bf16.msra.mxu0 %v347
        %440 = vmatpush.bf16.msra.mxu0 %v345
        %441 = vmatpush.bf16.msra.mxu0 %v343
        %442 = vmatmul.bf16.gmra.mxu0 %v242
        %v443 = vpop.f32.mrf.mxu0
        %v444 = vadd.f32 0.0, %v443
        %v445 = vpop.f32.mrf.mxu0
        %v446 = vadd.f32 0.0, %v445
        %447 = vdwg.mxu0
        %448 = vmatpush.bf16.msra.mxu0 %v373
        %449 = vmatpush.bf16.msra.mxu0 %v371
        %450 = vmatpush.bf16.msra.mxu0 %v369
        %451 = vmatpush.bf16.msra.mxu0 %v367
        %452 = vmatpush.bf16.msra.mxu0 %v365
        %453 = vmatpush.bf16.msra.mxu0 %v363
        %454 = vmatpush.bf16.msra.mxu0 %v361
        %455 = vmatpush.bf16.msra.mxu0 %v359
        %456 = vmatmul.bf16.gmra.mxu0 %v243
        %v457 = vpop.f32.mrf.mxu0
        %v458 = vadd.f32 %v444, %v457
        %v459 = vpop.f32.mrf.mxu0
        %v460 = vadd.f32 %v446, %v459
        %461 = vdwg.mxu0
        %v462 = vmul.f32 %v430, 0.088388346
        %v463 = vmul.f32 %v458, 0.088388346
        %v464 = vmul.f32 %v432, 0.088388346
        %v465 = vmul.f32 %v460, 0.088388346
        %v466 = vpack.c.bf16 %v463, %v462
        %v467 = vpack.c.bf16 %v465, %v464
        %468 = vst [vmem:[%s199] sm:$0xf] %v466
        %469 = vst [vmem:[%s199 + $0x4] sm:$0xf] %v467
        %v472 = vrot.slane %v466, 4
        %v473 = vrot.slane %v467, 4
        %s476 = scalar_lea.vmem %s199, 8 [#allocation7]
        %477 = vst [vmem:[%s476] sm:$0xf] %v472
        %478 = vst [vmem:[%s476 + $0x4] sm:$0xf] %v473
        %s479 = sand.u32 %s91, 1
        %s480 = scalar_lea.sflag [#allocation4], %s479
        %s481 = sand.u32 %s91, 1
        %s482 = smul.addr %s481, 16
        %s483 = scalar_lea.vmem [#allocation7], %s482
        // Predicated region
        $region37: #{tpu_custom_call.1} parent=27 // pred_check
          %p484 = pneg %p101
        $region38: #{tpu_custom_call.1} parent=27 // pred_check_branch
          %486 = sbr.rel (%p484) target = $region40
        $region39: #{tpu_custom_call.1} parent=27 // pred_region
          %s487 = smul.u32 2, %s25
          %489 = vsyncadd %s480, 0
          %s490 = smul.addr %s24, 4
          %s491 = sadd.s32 %s487, %s490
          %s492 = smul.addr %s491, 4
          %s493 = scalar_lea.hbm %s2, %s492
          %s494 = sshll.u32 %s483, 4
          %s495 = int_to_ptr.vmem [resolvable:$true] %s494
          %s496 = sshll.u32 %s493, 4
          %s497 = int_to_ptr.hbm [resolvable:$true] %s496
          %502 = dma.vmem_to_hbm [thread:$0]  %s495, 256, %s497, %s480, 64, 64, 4
        $region40: #{tpu_custom_call.1} parent=27 // pred_fallthru
          _
      $region28: #{tpu_custom_call.1} parent=5 // pred_fallthru
        _
      %p503 = scmp.le.s32.totalorder 2, %s15
      // Predicated region
      $region41: #{tpu_custom_call.1} parent=5 // pred_check
        %p504 = pneg %p503
      $region42: #{tpu_custom_call.1} parent=5 // pred_check_branch
        %506 = sbr.rel (%p504) target = $region44
      $region43: #{tpu_custom_call.1} parent=5 // pred_region
        %s507 = ssub.s32 %s15, 2
        // Predicated region
        $region45: #{tpu_custom_call.1} parent=43 // pred_check
          %p508 = pneg %p107
        $region46: #{tpu_custom_call.1} parent=43 // pred_check_branch
          %510 = sbr.rel (%p508) target = $region48
        $region47: #{tpu_custom_call.1} parent=43 // pred_region
          %s511 = sand.u32 %s92, 1
          %s512 = scalar_lea.sflag [#allocation4], %s511
          %s513 = sand.u32 %s92, 1
          %s514 = smul.addr %s513, 16
          %s515 = scalar_lea.vmem [#allocation7], %s514
          %517 = dma.done %s512, 256
        $region48: #{tpu_custom_call.1} parent=43 // pred_fallthru
          _
      $region44: #{tpu_custom_call.1} parent=5 // pred_fallthru
        _
    $region6: #{tpu_custom_call.1} parent=1 // loop_footer
      %s19 = sadd.s32 1, %s15
    $region7: #{tpu_custom_call.1} parent=1 // loop_footer_branch
      %14 = sbr.rel target = $region3
    $region8: #{tpu_custom_call.1} parent=1 // loop_exit
      _
    %518 = vsyncpa [#allocation3], 1
    %s519 = scalar_lea.sflag [#allocation3], 1
    %520 = vsyncpa %s519, 1
    %521 = vsyncpa [#allocation6], 1
    %522 = vsyncpa [#allocation4], 1
    %s523 = scalar_lea.sflag [#allocation4], 1
    %524 = vsyncpa %s523, 1

</llo_original>
